<compile_context>
chip_gen: v7x
topology: tpu7x:2x2x1
jax: 0.10.0
libtpu: 0.0.40
codegen_flags: <defaults>
</compile_context>

<pallas_src>
import jax
import jax.numpy as jnp
from jax.experimental import pallas as pl
from jax.experimental.pallas import tpu as pltpu


def _make_cin_kernel(num_field, heads, emb_dim, tb):
    """Build the fused multi-layer CIN kernel body (TB batch rows per step)."""
    F = num_field
    D = emb_dim
    n_layers = len(heads)

    def kernel(e_ref, *args):
        w_refs = args[:n_layers]
        p_ref = args[n_layers]

        # e : [F, TB*D] -- original embeddings, batch stacked along lanes.
        e = e_ref[...]
        x = e                               # current feature maps, [L, TB*D]
        off = 0
        for l in range(n_layers):
            L = x.shape[0]
            H = heads[l]
            w = w_refs[l][...]                                   # [H, L*F]
            # inter[i*F + j, (b, d)] = x[i, (b, d)] * e[j, (b, d)]
            # (reshape merges outer+sublane dims -> layout-preserving for F%8==0)
            inter = (x[:, None, :] * e[None, :, :]).reshape(L * F, tb * D)
            # One MXU matmul per layer, N = TB*D, f32 accumulation.
            xn = jnp.dot(w, inter, preferred_element_type=jnp.float32)  # [H, TB*D]
            # Pool over the embedding dim inside each batch row's lane group.
            pooled = jnp.sum(xn.reshape(H, tb, D), axis=-1)      # [H, TB]
            p_ref[off:off + H, :] = pooled.astype(p_ref.dtype)
            off += H
            # Last layer's feature maps never leave VMEM (only pooled output is
            # stored); earlier layers feed the next iteration.
            if l + 1 < n_layers:
                x = xn.astype(e.dtype)

    return kernel


def _cin_forward_impl(x_emb, ws, use_bf16=True, tb=None):
    B, F, D = x_emb.shape
    heads = tuple(int(w.shape[0]) for w in ws)
    last = F
    for w, h in zip(ws, heads):
        assert w.shape == (h, last * F), (w.shape, (h, last * F))
        last = h
    h_total = sum(heads)

    # Batch tile: whole (small) batch in one step, or 128 rows per step.  With
    # tb a multiple of 128 (or == padded batch) every block satisfies the
    # (8,128) tiling rules for any F/D/H, and VMEM stays far below the limit.
    if tb is None:
        tb = B if B <= 128 else 128
    bp = -(-B // tb) * tb                     # ceil(B / tb) * tb
    assert tb == bp or tb % 128 == 0, \
        "tb must equal padded batch or be a multiple of 128"

    in_dtype = jnp.bfloat16 if use_bf16 else jnp.float32
    x_p = x_emb if bp == B else jnp.pad(x_emb, ((0, bp - B), (0, 0), (0, 0)))
    # Layout plumbing (wrapper side): stack batch along the lane axis so each
    # grid step sees a lane-dense [F, TB*D] slab; fold the dtype cast in here so
    # the kernel reads half the HBM bytes on the bf16 path.
    e2 = jnp.transpose(x_p, (1, 0, 2)).reshape(F, bp * D).astype(in_dtype)
    ws_c = [w.astype(in_dtype) for w in ws]

    kernel = _make_cin_kernel(F, heads, D, tb)

    in_specs = [pl.BlockSpec((F, tb * D), lambda b: (0, b))]
    for w in ws_c:
        # Constant index map -> tiny weights are staged once and stay resident
        # in VMEM across all grid steps.
        in_specs.append(pl.BlockSpec(w.shape, lambda b: (0, 0)))

    p_t = pl.pallas_call(
        kernel,
        out_shape=jax.ShapeDtypeStruct((h_total, bp), jnp.float32),
        grid=(bp // tb,),
        in_specs=in_specs,
        out_specs=pl.BlockSpec((h_total, tb), lambda b: (0, b)),
        compiler_params=pltpu.CompilerParams(
            dimension_semantics=("parallel",),
            vmem_limit_bytes=48 * 1024 * 1024),
    )(e2, *ws_c)

    # [H_total, Bp] -> [B, H_total]  (tiny; matches torch.cat(p, dim=-1) order).
    return p_t[:, :B].T


cin_forward = jax.jit(_cin_forward_impl, static_argnames=("use_bf16", "tb"))


def cin_init(key, num_field, cin_size):
    """Deterministic weight init matching the module's shapes (no bias)."""
    if not isinstance(cin_size, (list, tuple)):
        # scalar branch in the PyTorch code == two layers of width cin_size
        cin_size = [cin_size, cin_size]
    ws = []
    last = num_field
    for h in cin_size:
        key, sub = jax.random.split(key)
        bound = 1.0 / float(last * num_field) ** 0.5   # nn.Linear-style scale
        ws.append(jax.random.uniform(sub, (h, last * num_field),
                                     jnp.float32, -bound, bound))
        last = h
    return ws


def cin_reference(x_emb, ws):
    """Pure-JAX f32 reference mirroring the PyTorch forward exactly."""
    B, F, D = x_emb.shape
    x = x_emb
    ps = []
    for w in ws:
        L = x.shape[1]
        inter = (x[:, :, None, :] * x_emb[:, None, :, :]).reshape(B, L * F, D)
        x = jnp.einsum('bnd,hn->bhd', inter, w)
        ps.append(x.sum(-1))
    return jnp.concatenate(ps, axis=-1)


if __name__ == "__main__":
    key = jax.random.PRNGKey(0)
    k_x1, k_x2, k_w = jax.random.split(key, 3)

    num_field, emb_dim = 8, 128
    cin_size = [16, 8]                      # list branch; output_dim = 24
    ws = cin_init(k_w, num_field, cin_size)

    # Case 1: tiny batch -> single grid step with full-extent blocks, f32 path
    # (exact numeric check against the pure-JAX reference).
    B1 = 2
    x_small = jax.random.normal(k_x1, (B1, num_field, emb_dim), jnp.float32)
    out1 = jax.block_until_ready(cin_forward(x_small, ws, use_bf16=False))
    ref1 = cin_reference(x_small, ws)
    assert out1.shape == (B1, sum(cin_size)), out1.shape
    assert jnp.allclose(out1, ref1, atol=1e-3, rtol=1e-3), \
        float(jnp.max(jnp.abs(out1 - ref1)))

    # Case 2: batch > TB -> multi-step parallel grid with padding; bf16 MXU
    # inputs with f32 accumulation (perf path), looser tolerance vs f32 ref.
    B2 = 300
    x_big = jax.random.normal(k_x2, (B2, num_field, emb_dim), jnp.float32)
    ref2 = cin_reference(x_big, ws)
    out2 = jax.block_until_ready(cin_forward(x_big, ws))
    assert out2.shape == (B2, sum(cin_size)), out2.shape
    assert jnp.allclose(out2, ref2, atol=1.5e-1, rtol=2e-2), \
        float(jnp.max(jnp.abs(out2 - ref2)))

    print("KERNEL_OK")
</pallas_src>

<mosaic_0001>
module attributes {stable_mosaic.version = 11 : i64} {
  func.func @kernel(%arg0: i32, %arg1: memref<8x256xf32, #tpu.memory_space<vmem>>, %arg2: memref<16x64xf32, #tpu.memory_space<vmem>>, %arg3: memref<8x128xf32, #tpu.memory_space<vmem>>, %arg4: memref<24x2xf32, #tpu.memory_space<vmem>>) attributes {dimension_semantics = [#tpu.dimension_semantics<parallel>], iteration_bounds = array<i64: 1>, scalar_prefetch = 0 : i64, scratch_operands = 0 : i64, tpu.core_type = #tpu.core_type<tc>, window_params = [{transform_indices = @transform_0, window_bounds = array<i64: 8, 256>}, {pipeline_mode = #tpu.pipeline_mode<synchronous>, transform_indices = @transform_1, window_bounds = array<i64: 16, 64>}, {pipeline_mode = #tpu.pipeline_mode<synchronous>, transform_indices = @transform_2, window_bounds = array<i64: 8, 128>}, {transform_indices = @transform_3, window_bounds = array<i64: 24, 2>}]} {
    %c0 = arith.constant 0 : index
    %c0_0 = arith.constant 0 : index
    %0 = vector.load %arg1[%c0, %c0_0] : memref<8x256xf32, #tpu.memory_space<vmem>>, vector<8x256xf32>
    %c0_1 = arith.constant 0 : index
    %c0_2 = arith.constant 0 : index
    %1 = vector.load %arg2[%c0_1, %c0_2] : memref<16x64xf32, #tpu.memory_space<vmem>>, vector<16x64xf32>
    %2 = vector.shape_cast %0 : vector<8x256xf32> to vector<8x1x256xf32>
    %3 = vector.shape_cast %0 : vector<8x256xf32> to vector<1x8x256xf32>
    %4 = vector.broadcast %2 : vector<8x1x256xf32> to vector<8x8x256xf32>
    %5 = vector.broadcast %3 : vector<1x8x256xf32> to vector<8x8x256xf32>
    %6 = arith.mulf %4, %5 : vector<8x8x256xf32>
    %7 = vector.shape_cast %6 : vector<8x8x256xf32> to vector<64x256xf32>
    %cst = arith.constant dense<0.000000e+00> : vector<16x256xf32>
    %8 = tpu.matmul %1, %7, %cst {dimension_numbers = #tpu.dot_dimension_numbers<[1], [0], [0], [1], [0, 0, 1, 1], [], []>} : vector<16x64xf32>, vector<64x256xf32>, vector<16x256xf32> -> vector<16x256xf32>
    %9 = vector.shape_cast %8 : vector<16x256xf32> to vector<16x2x128xf32>
    %cst_3 = arith.constant dense<0.000000e+00> : vector<16x2xf32>
    %10 = vector.multi_reduction <add>, %9, %cst_3 [2] : vector<16x2x128xf32> to vector<16x2xf32>
    %c0_4 = arith.constant 0 : index
    %c0_5 = arith.constant 0 : index
    %11 = vector.load %arg4[%c0_4, %c0_5] : memref<24x2xf32, #tpu.memory_space<vmem>>, vector<16x2xf32>
    tpu.vector_store %arg4[%c0_4, %c0_5], %10 {strides = array<i32>} : memref<24x2xf32, #tpu.memory_space<vmem>>, vector<16x2xf32>,
    %c0_6 = arith.constant 0 : index
    %c0_7 = arith.constant 0 : index
    %12 = vector.load %arg3[%c0_6, %c0_7] : memref<8x128xf32, #tpu.memory_space<vmem>>, vector<8x128xf32>
    %13 = vector.shape_cast %8 : vector<16x256xf32> to vector<16x1x256xf32>
    %14 = vector.shape_cast %0 : vector<8x256xf32> to vector<1x8x256xf32>
    %15 = vector.broadcast %13 : vector<16x1x256xf32> to vector<16x8x256xf32>
    %16 = vector.broadcast %14 : vector<1x8x256xf32> to vector<16x8x256xf32>
    %17 = arith.mulf %15, %16 : vector<16x8x256xf32>
    %18 = vector.shape_cast %17 : vector<16x8x256xf32> to vector<128x256xf32>
    %cst_8 = arith.constant dense<0.000000e+00> : vector<8x256xf32>
    %19 = tpu.matmul %12, %18, %cst_8 {dimension_numbers = #tpu.dot_dimension_numbers<[1], [0], [0], [1], [0, 0, 1, 1], [], []>} : vector<8x128xf32>, vector<128x256xf32>, vector<8x256xf32> -> vector<8x256xf32>
    %20 = vector.shape_cast %19 : vector<8x256xf32> to vector<8x2x128xf32>
    %cst_9 = arith.constant dense<0.000000e+00> : vector<8x2xf32>
    %21 = vector.multi_reduction <add>, %20, %cst_9 [2] : vector<8x2x128xf32> to vector<8x2xf32>
    %c16 = arith.constant 16 : index
    %c0_10 = arith.constant 0 : index
    %22 = vector.load %arg4[%c16, %c0_10] : memref<24x2xf32, #tpu.memory_space<vmem>>, vector<8x2xf32>
    tpu.vector_store %arg4[%c16, %c0_10], %21 {strides = array<i32>} : memref<24x2xf32, #tpu.memory_space<vmem>>, vector<8x2xf32>,
    return
  }
  func.func @transform_0(%arg0: i32) -> (i32, i32) {
    %c0_i32 = arith.constant 0 : i32
    %c0_i32_0 = arith.constant 0 : i32
    return %c0_i32, %arg0 : i32, i32
  }
  func.func @transform_1(%arg0: i32) -> (i32, i32) {
    %c0_i32 = arith.constant 0 : i32
    %c0_i32_0 = arith.constant 0 : i32
    %c0_i32_1 = arith.constant 0 : i32
    return %c0_i32, %c0_i32_0 : i32, i32
  }
  func.func @transform_2(%arg0: i32) -> (i32, i32) {
    %c0_i32 = arith.constant 0 : i32
    %c0_i32_0 = arith.constant 0 : i32
    %c0_i32_1 = arith.constant 0 : i32
    return %c0_i32, %c0_i32_0 : i32, i32
  }
  func.func @transform_3(%arg0: i32) -> (i32, i32) {
    %c0_i32 = arith.constant 0 : i32
    %c0_i32_0 = arith.constant 0 : i32
    return %c0_i32, %arg0 : i32, i32
  }
}

</mosaic_0001>

<llo_original>
// kernel: _cin_forward_impl.1
$region0: #{_cin_forward_impl.1}
  #allocation0 [shape = 'u32[]', space=smem, size = 0x4, offset = 0x4, fixed_abs, tag = 'smem constant byte address 0x4 - core index']
  #allocation1 [shape = 'u32[144,128]{1,0:T(1,128)}', space=vmem, size = 0x12000, scoped, tag = 'internal scratch']
  %s0 = inlined_call_operand.hbm [shape: f32[8,256], index: 0, kind: input, shape index: {}]
  %s1 = inlined_call_operand.hbm [shape: f32[16,64], index: 1, kind: input, shape index: {}]
  %s2 = inlined_call_operand.vmem [shape: f32[8,128], index: 2, kind: input, shape index: {}]
  %s3 = inlined_call_operand.vmem [shape: f32[24,2], index: 3, kind: output, shape index: {}]
  %s4 = sld [smem:[#allocation0]]
  $region30: #{_cin_forward_impl.1} parent=0
    _
  %s6 = ssub.s32 1, %s4
  %s7 = scalar_select 0, %s6, %s4
  $region1: #{_cin_forward_impl.1} parent=0
    #allocation2 [shape = 'u8[8192]{0}', space=vmem, size = 0x2000, scoped, tag = 'input window, operand 0, single buffered']
    #allocation3 [shape = 's32[1]{0}', space=sflag, size = 0x4, scoped, tag = 'scoped memory for _cin_forward_impl.1']
    #allocation4 [shape = 'u8[8192]{0}', space=vmem, size = 0x2000, scoped, tag = 'input window, operand 1, single buffered']
    #allocation5 [shape = 's32[1]{0}', space=sflag, size = 0x4, scoped, tag = 'scoped memory for _cin_forward_impl.1']
    %8 = vsyncpa [#allocation3], 0
    %9 = vsyncpa [#allocation5], 0
    // Predicated region
    $region2: #{_cin_forward_impl.1} parent=1 // pred_check
      _
    $region3: #{_cin_forward_impl.1} parent=1 // pred_check_branch
      %11 = sbr.rel (0) target = $region5
    $region4: #{_cin_forward_impl.1} parent=1 // pred_region
      %s13 = ssub.s32 256, 256
      %14 = vsyncadd [#allocation3], %s13
      %s16 = sshll.u32 [#allocation2], 4
      %s17 = int_to_ptr.vmem [resolvable:$true] %s16
      %19 = dma.hbm_to_vmem [thread:$0]  %s0, 256, %s17, [#allocation3]
    $region5: #{_cin_forward_impl.1} parent=1 // pred_fallthru
      _
    // Predicated region
    $region6: #{_cin_forward_impl.1} parent=1 // pred_check
      _
    $region7: #{_cin_forward_impl.1} parent=1 // pred_check_branch
      %21 = sbr.rel (0) target = $region9
    $region8: #{_cin_forward_impl.1} parent=1 // pred_region
      %s23 = ssub.s32 256, 256
      %24 = vsyncadd [#allocation5], %s23
      %s25 = sshll.u32 [#allocation4], 4
      %s26 = int_to_ptr.vmem [resolvable:$true] %s25
      %31 = dma.hbm_to_vmem [thread:$0]  %s1, 256, %s26, [#allocation5], 128, 128, 8
    $region9: #{_cin_forward_impl.1} parent=1 // pred_fallthru
      _
    // Predicated region
    $region10: #{_cin_forward_impl.1} parent=1 // pred_check
      _
    $region11: #{_cin_forward_impl.1} parent=1 // pred_check_branch
      %33 = sbr.rel (0) target = $region13
    $region12: #{_cin_forward_impl.1} parent=1 // pred_region
      _
    $region13: #{_cin_forward_impl.1} parent=1 // pred_fallthru
      _
    // Predicated region
    $region14: #{_cin_forward_impl.1} parent=1 // pred_check
      _
    $region15: #{_cin_forward_impl.1} parent=1 // pred_check_branch
      %35 = sbr.rel (0) target = $region17
    $region16: #{_cin_forward_impl.1} parent=1 // pred_region
      %36 = dma.done [#allocation3], 256
    $region17: #{_cin_forward_impl.1} parent=1 // pred_fallthru
      _
    // Predicated region
    $region18: #{_cin_forward_impl.1} parent=1 // pred_check
      _
    $region19: #{_cin_forward_impl.1} parent=1 // pred_check_branch
      %38 = sbr.rel (0) target = $region21
    $region20: #{_cin_forward_impl.1} parent=1 // pred_region
      %39 = dma.done [#allocation5], 256
    $region21: #{_cin_forward_impl.1} parent=1 // pred_fallthru
      _
    %v40 = vld [vmem:[#allocation2] sm:$0xff]
    %v41 = vld [vmem:[#allocation2 + $0x8] sm:$0xff]
    %v42 = vld [vmem:[#allocation4] sm:$0xff]
    %v43 = vld [vmem:[#allocation4 + $0x8] sm:$0xff]
    %v46 = vcombine.low %v40, %v41
    %v47 = vcombine.high %v40, %v41
    %v49 = vunpack.c.l.s4 1966171168
    %v50 = vunpack.c.0.s8 %v49
    %v51 = vlaneseq
    %v52 = vshrl.u32 %v51, 7
    %v53 = vsub.s32 %v50, %v52
    %v54 = vrot.slane %v46, %v53
    %v56 = vunpack.c.l.s4 1966171168
    %v57 = vunpack.c.0.s8 %v56
    %v58 = vlaneseq
    %v59 = vshrl.u32 %v58, 7
    %v60 = vsub.s32 %v57, %v59
    %v61 = vrot.slane %v47, %v60
    %v62 = vcombine.high %v54, %v54
    %v63 = vcombine.high %v61, %v61
    %v65 = vunpack.c.l.s4 1966171168
    %v66 = vunpack.c.0.s8 %v65
    %v67 = vlaneseq
    %v68 = vshrl.u32 %v67, 7
    %v69 = vsub.s32 %v66, %v68
    %v70 = vrot.slane %v54, %v69
    %v72 = vunpack.c.l.s4 1966171168
    %v73 = vunpack.c.0.s8 %v72
    %v74 = vlaneseq
    %v75 = vshrl.u32 %v74, 7
    %v76 = vsub.s32 %v73, %v75
    %v77 = vrot.slane %v61, %v76
    %v79 = vunpack.c.l.s4 1966171168
    %v80 = vunpack.c.0.s8 %v79
    %v81 = vlaneseq
    %v82 = vshrl.u32 %v81, 7
    %v83 = vsub.s32 %v80, %v82
    %v84 = vrot.slane %v62, %v83
    %v86 = vunpack.c.l.s4 1966171168
    %v87 = vunpack.c.0.s8 %v86
    %v88 = vlaneseq
    %v89 = vshrl.u32 %v88, 7
    %v90 = vsub.s32 %v87, %v89
    %v91 = vrot.slane %v63, %v90
    %v92 = vcombine.high %v70, %v70
    %v93 = vcombine.high %v77, %v77
    %v94 = vcombine.high %v84, %v84
    %v95 = vcombine.high %v91, %v91
    %v96 = vlaneseq
    %v97 = vshrl.u32 %v96, 7
    %v98 = vsub.s32 0, %v97
    %v99 = vrot.slane %v70, %v98
    %v100 = vlaneseq
    %v101 = vshrl.u32 %v100, 7
    %v102 = vsub.s32 1, %v101
    %v103 = vrot.slane %v70, %v102
    %v104 = vlaneseq
    %v105 = vshrl.u32 %v104, 7
    %v106 = vsub.s32 0, %v105
    %v107 = vrot.slane %v84, %v106
    %v108 = vlaneseq
    %v109 = vshrl.u32 %v108, 7
    %v110 = vsub.s32 1, %v109
    %v111 = vrot.slane %v84, %v110
    %v112 = vlaneseq
    %v113 = vshrl.u32 %v112, 7
    %v114 = vsub.s32 0, %v113
    %v115 = vrot.slane %v92, %v114
    %v116 = vlaneseq
    %v117 = vshrl.u32 %v116, 7
    %v118 = vsub.s32 1, %v117
    %v119 = vrot.slane %v92, %v118
    %v120 = vlaneseq
    %v121 = vshrl.u32 %v120, 7
    %v122 = vsub.s32 0, %v121
    %v123 = vrot.slane %v94, %v122
    %v124 = vlaneseq
    %v125 = vshrl.u32 %v124, 7
    %v126 = vsub.s32 1, %v125
    %v127 = vrot.slane %v94, %v126
    %v128 = vlaneseq
    %v129 = vshrl.u32 %v128, 7
    %v130 = vsub.s32 0, %v129
    %v131 = vrot.slane %v77, %v130
    %v132 = vlaneseq
    %v133 = vshrl.u32 %v132, 7
    %v134 = vsub.s32 1, %v133
    %v135 = vrot.slane %v77, %v134
    %v136 = vlaneseq
    %v137 = vshrl.u32 %v136, 7
    %v138 = vsub.s32 0, %v137
    %v139 = vrot.slane %v91, %v138
    %v140 = vlaneseq
    %v141 = vshrl.u32 %v140, 7
    %v142 = vsub.s32 1, %v141
    %v143 = vrot.slane %v91, %v142
    %v144 = vlaneseq
    %v145 = vshrl.u32 %v144, 7
    %v146 = vsub.s32 0, %v145
    %v147 = vrot.slane %v93, %v146
    %v148 = vlaneseq
    %v149 = vshrl.u32 %v148, 7
    %v150 = vsub.s32 1, %v149
    %v151 = vrot.slane %v93, %v150
    %v152 = vlaneseq
    %v153 = vshrl.u32 %v152, 7
    %v154 = vsub.s32 0, %v153
    %v155 = vrot.slane %v95, %v154
    %v156 = vlaneseq
    %v157 = vshrl.u32 %v156, 7
    %v158 = vsub.s32 1, %v157
    %v159 = vrot.slane %v95, %v158
    %v176 = vmul.f32 %v99, %v40
    %v177 = vmul.f32 %v103, %v41
    %v178 = vmul.f32 %v107, %v40
    %v179 = vmul.f32 %v111, %v41
    %v180 = vmul.f32 %v115, %v40
    %v181 = vmul.f32 %v119, %v41
    %v182 = vmul.f32 %v123, %v40
    %v183 = vmul.f32 %v127, %v41
    %v184 = vmul.f32 %v131, %v40
    %v185 = vmul.f32 %v135, %v41
    %v186 = vmul.f32 %v139, %v40
    %v187 = vmul.f32 %v143, %v41
    %v188 = vmul.f32 %v147, %v40
    %v189 = vmul.f32 %v151, %v41
    %v190 = vmul.f32 %v155, %v40
    %v191 = vmul.f32 %v159, %v41
    %vm192 = vcmask 523264
    %v194 = vsel %vm192, %v42, 0
    %v197 = vsel %vm192, %v43, 0
    %199 = vmatprep.subr.mxu0 %v177
    %200 = vmatpush1.msra.mxu0 %v176
    %201 = vmatprep.subr.mxu0 %v179
    %202 = vmatpush1.msra.mxu0 %v178
    %203 = vmatprep.subr.mxu0 %v181
    %204 = vmatpush1.msra.mxu0 %v180
    %205 = vmatprep.subr.mxu0 %v183
    %206 = vmatpush1.msra.mxu0 %v182
    %207 = vmatprep.subr.mxu0 %v185
    %208 = vmatpush1.msra.mxu0 %v184
    %209 = vmatprep.subr.mxu0 %v187
    %210 = vmatpush1.msra.mxu0 %v186
    %211 = vmatprep.subr.mxu0 %v189
    %212 = vmatpush1.msra.mxu0 %v188
    %213 = vmatprep.subr.mxu0 %v191
    %214 = vmatpush1.msra.mxu0 %v190
    %215 = vmatprep.subr.mxu0 0.0
    %216 = vmatpush1.msra.mxu0 0.0
    %217 = vmatprep.subr.mxu0 0.0
    %218 = vmatpush1.msra.mxu0 0.0
    %219 = vmatprep.subr.mxu0 0.0
    %220 = vmatpush1.msra.mxu0 0.0
    %221 = vmatprep.subr.mxu0 0.0
    %222 = vmatpush1.msra.mxu0 0.0
    %223 = vmatprep.subr.mxu0 0.0
    %224 = vmatpush1.msra.mxu0 0.0
    %225 = vmatprep.subr.mxu0 0.0
    %226 = vmatpush1.msra.mxu0 0.0
    %227 = vmatprep.subr.mxu0 0.0
    %228 = vmatpush1.msra.mxu0 0.0
    %229 = vmatprep.subr.mxu0 0.0
    %230 = vmatpush1.msra.mxu0 0.0
    %231 = vmatprep.subr.mxu0 0.0
    %232 = vmatpush1.msra.mxu0 0.0
    %233 = vmatprep.subr.mxu0 0.0
    %234 = vmatpush1.msra.mxu0 0.0
    %235 = vmatprep.subr.mxu0 0.0
    %236 = vmatpush1.msra.mxu0 0.0
    %237 = vmatprep.subr.mxu0 0.0
    %238 = vmatpush1.msra.mxu0 0.0
    %239 = vmatprep.subr.mxu0 0.0
    %240 = vmatpush1.msra.mxu0 0.0
    %241 = vmatprep.subr.mxu0 0.0
    %242 = vmatpush1.msra.mxu0 0.0
    %243 = vmatprep.subr.mxu0 0.0
    %244 = vmatpush1.msra.mxu0 0.0
    %245 = vmatprep.subr.mxu0 0.0
    %246 = vmatpush1.msra.mxu0 0.0
    %247 = vmatprep.subr.mxu0 0.0
    %248 = vmatpush1.msra.mxu0 0.0
    %249 = vmatprep.subr.mxu0 0.0
    %250 = vmatpush1.msra.mxu0 0.0
    %251 = vmatprep.subr.mxu0 0.0
    %252 = vmatpush1.msra.mxu0 0.0
    %253 = vmatprep.subr.mxu0 0.0
    %254 = vmatpush1.msra.mxu0 0.0
    %255 = vmatprep.subr.mxu0 0.0
    %256 = vmatpush1.msra.mxu0 0.0
    %257 = vmatprep.subr.mxu0 0.0
    %258 = vmatpush1.msra.mxu0 0.0
    %259 = vmatprep.subr.mxu0 0.0
    %260 = vmatpush1.msra.mxu0 0.0
    %261 = vmatprep.subr.mxu0 0.0
    %262 = vmatpush1.msra.mxu0 0.0
    %263 = vmatprep.mubr.f32.mxu0 0.0
    %264 = vmatmul.mubr.f32.gmra.mrb[0].mxu0 %v194
    %v265 = vpop.f32.mrb[0].mxu0
    %v266 = vadd.f32 0.0, %v265
    %v267 = vpop.f32.mrb[0].mxu0
    %v268 = vadd.f32 0.0, %v267
    %269 = vmatprep.mubr.f32.mxu0 0.0
    %270 = vmatmul.mubr.f32.gmra.mrb[0].mxu0 %v197
    %v271 = vpop.f32.mrb[0].mxu0
    %v272 = vadd.f32 0.0, %v271
    %v273 = vpop.f32.mrb[0].mxu0
    %v274 = vadd.f32 0.0, %v273
    %275 = vdwg.mxu0
    %v276 = vcombine.high %v266, 0.0
    %v278 = vunpack.c.l.s4 1983009808
    %v279 = vunpack.c.0.s8 %v278
    %v280 = vlaneseq
    %v281 = vshrl.u32 %v280, 7
    %v282 = vsub.s32 %v279, %v281
    %v283 = vrot.slane %v266, %v282
    %v285 = vunpack.c.l.s4 1983009808
    %v286 = vunpack.c.0.s8 %v285
    %v287 = vlaneseq
    %v288 = vshrl.u32 %v287, 7
    %v289 = vsub.s32 %v286, %v288
    %v290 = vrot.slane %v276, %v289
    %v291 = vcombine.high %v268, 0.0
    %v293 = vunpack.c.l.s4 1983009808
    %v294 = vunpack.c.0.s8 %v293
    %v295 = vlaneseq
    %v296 = vshrl.u32 %v295, 7
    %v297 = vsub.s32 %v294, %v296
    %v298 = vrot.slane %v268, %v297
    %v300 = vunpack.c.l.s4 1983009808
    %v301 = vunpack.c.0.s8 %v300
    %v302 = vlaneseq
    %v303 = vshrl.u32 %v302, 7
    %v304 = vsub.s32 %v301, %v303
    %v305 = vrot.slane %v291, %v304
    %v306 = vcombine.low %v283, %v298
    %v307 = vcombine.high %v283, %v298
    %v309 = vunpack.c.l.s4 1934713408
    %v310 = vunpack.c.0.s8 %v309
    %v311 = vlaneseq
    %v312 = vshrl.u32 %v311, 7
    %v313 = vsub.s32 %v310, %v312
    %v314 = vrot.slane %v306, %v313
    %v316 = vunpack.c.l.s4 1934713408
    %v317 = vunpack.c.0.s8 %v316
    %v318 = vlaneseq
    %v319 = vshrl.u32 %v318, 7
    %v320 = vsub.s32 %v317, %v319
    %v321 = vrot.slane %v307, %v320
    %v322 = vcombine.low %v290, %v305
    %v323 = vcombine.high %v290, %v305
    %v325 = vunpack.c.l.s4 1934713408
    %v326 = vunpack.c.0.s8 %v325
    %v327 = vlaneseq
    %v328 = vshrl.u32 %v327, 7
    %v329 = vsub.s32 %v326, %v328
    %v330 = vrot.slane %v322, %v329
    %v332 = vunpack.c.l.s4 1934713408
    %v333 = vunpack.c.0.s8 %v332
    %v334 = vlaneseq
    %v335 = vshrl.u32 %v334, 7
    %v336 = vsub.s32 %v333, %v335
    %v337 = vrot.slane %v323, %v336
    %v338 = vcombine.high %v314, 0.0
    %v339 = vcombine.high %v321, 0.0
    %v340 = vcombine.high %v330, 0.0
    %v341 = vcombine.high %v337, 0.0
    %v342 = vcombine.high %v272, 0.0
    %v344 = vunpack.c.l.s4 1983009808
    %v345 = vunpack.c.0.s8 %v344
    %v346 = vlaneseq
    %v347 = vshrl.u32 %v346, 7
    %v348 = vsub.s32 %v345, %v347
    %v349 = vrot.slane %v272, %v348
    %v351 = vunpack.c.l.s4 1983009808
    %v352 = vunpack.c.0.s8 %v351
    %v353 = vlaneseq
    %v354 = vshrl.u32 %v353, 7
    %v355 = vsub.s32 %v352, %v354
    %v356 = vrot.slane %v342, %v355
    %v357 = vcombine.high %v274, 0.0
    %v359 = vunpack.c.l.s4 1983009808
    %v360 = vunpack.c.0.s8 %v359
    %v361 = vlaneseq
    %v362 = vshrl.u32 %v361, 7
    %v363 = vsub.s32 %v360, %v362
    %v364 = vrot.slane %v274, %v363
    %v366 = vunpack.c.l.s4 1983009808
    %v367 = vunpack.c.0.s8 %v366
    %v368 = vlaneseq
    %v369 = vshrl.u32 %v368, 7
    %v370 = vsub.s32 %v367, %v369
    %v371 = vrot.slane %v357, %v370
    %v372 = vcombine.low %v349, %v364
    %v373 = vcombine.high %v349, %v364
    %v375 = vunpack.c.l.s4 1934713408
    %v376 = vunpack.c.0.s8 %v375
    %v377 = vlaneseq
    %v378 = vshrl.u32 %v377, 7
    %v379 = vsub.s32 %v376, %v378
    %v380 = vrot.slane %v372, %v379
    %v382 = vunpack.c.l.s4 1934713408
    %v383 = vunpack.c.0.s8 %v382
    %v384 = vlaneseq
    %v385 = vshrl.u32 %v384, 7
    %v386 = vsub.s32 %v383, %v385
    %v387 = vrot.slane %v373, %v386
    %v388 = vcombine.low %v356, %v371
    %v389 = vcombine.high %v356, %v371
    %v391 = vunpack.c.l.s4 1934713408
    %v392 = vunpack.c.0.s8 %v391
    %v393 = vlaneseq
    %v394 = vshrl.u32 %v393, 7
    %v395 = vsub.s32 %v392, %v394
    %v396 = vrot.slane %v388, %v395
    %v398 = vunpack.c.l.s4 1934713408
    %v399 = vunpack.c.0.s8 %v398
    %v400 = vlaneseq
    %v401 = vshrl.u32 %v400, 7
    %v402 = vsub.s32 %v399, %v401
    %v403 = vrot.slane %v389, %v402
    %v404 = vcombine.high %v380, 0.0
    %v405 = vcombine.high %v387, 0.0
    %v406 = vcombine.high %v396, 0.0
    %v407 = vcombine.high %v403, 0.0
    %vm408 = vcmask 1041408
    %v409 = vsel %vm408, %v314, 0.0
    %410 = vadd.xlane.f32.xlu0 %v409
    %v411 = vpop.xlane.xlu0 %410
    %v412 = vsel %vm408, %v338, 0.0
    %413 = vadd.xlane.f32.xlu0 %v412
    %v414 = vpop.xlane.xlu0 %413
    %v415 = vsel %vm408, %v321, 0.0
    %416 = vadd.xlane.f32.xlu0 %v415
    %v417 = vpop.xlane.xlu0 %416
    %v418 = vsel %vm408, %v339, 0.0
    %419 = vadd.xlane.f32.xlu0 %v418
    %v420 = vpop.xlane.xlu0 %419
    %v421 = vsel %vm408, %v330, 0.0
    %422 = vadd.xlane.f32.xlu0 %v421
    %v423 = vpop.xlane.xlu0 %422
    %v424 = vsel %vm408, %v340, 0.0
    %425 = vadd.xlane.f32.xlu0 %v424
    %v426 = vpop.xlane.xlu0 %425
    %v427 = vsel %vm408, %v337, 0.0
    %428 = vadd.xlane.f32.xlu0 %v427
    %v429 = vpop.xlane.xlu0 %428
    %v430 = vsel %vm408, %v341, 0.0
    %431 = vadd.xlane.f32.xlu0 %v430
    %v432 = vpop.xlane.xlu0 %431
    %v433 = vsel %vm408, %v380, 0.0
    %434 = vadd.xlane.f32.xlu0 %v433
    %v435 = vpop.xlane.xlu0 %434
    %v436 = vsel %vm408, %v404, 0.0
    %437 = vadd.xlane.f32.xlu0 %v436
    %v438 = vpop.xlane.xlu0 %437
    %v439 = vsel %vm408, %v387, 0.0
    %440 = vadd.xlane.f32.xlu0 %v439
    %v441 = vpop.xlane.xlu0 %440
    %v442 = vsel %vm408, %v405, 0.0
    %443 = vadd.xlane.f32.xlu0 %v442
    %v444 = vpop.xlane.xlu0 %443
    %v445 = vsel %vm408, %v396, 0.0
    %446 = vadd.xlane.f32.xlu0 %v445
    %v447 = vpop.xlane.xlu0 %446
    %v448 = vsel %vm408, %v406, 0.0
    %449 = vadd.xlane.f32.xlu0 %v448
    %v450 = vpop.xlane.xlu0 %449
    %v451 = vsel %vm408, %v403, 0.0
    %452 = vadd.xlane.f32.xlu0 %v451
    %v453 = vpop.xlane.xlu0 %452
    %v454 = vsel %vm408, %v407, 0.0
    %455 = vadd.xlane.f32.xlu0 %v454
    %v456 = vpop.xlane.xlu0 %455
    %v473 = vlaneseq
    %v474 = vand.u32 %v473, 127
    %v475 = vlaneseq
    %v476 = vshrl.u32 %v475, 7
    %v477 = vsub.s32 %v474, %v476
    %v478 = vrot.slane %v411, %v477
    %v479 = vlaneseq
    %v480 = vshrl.u32 %v479, 7
    %v481 = vsub.s32 %v474, %v480
    %v482 = vrot.slane %v414, %v481
    %v483 = vlaneseq
    %v484 = vshrl.u32 %v483, 7
    %v485 = vsub.s32 %v474, %v484
    %v486 = vrot.slane %v417, %v485
    %v487 = vlaneseq
    %v488 = vshrl.u32 %v487, 7
    %v489 = vsub.s32 %v474, %v488
    %v490 = vrot.slane %v420, %v489
    %v491 = vlaneseq
    %v492 = vshrl.u32 %v491, 7
    %v493 = vsub.s32 %v474, %v492
    %v494 = vrot.slane %v423, %v493
    %v495 = vlaneseq
    %v496 = vshrl.u32 %v495, 7
    %v497 = vsub.s32 %v474, %v496
    %v498 = vrot.slane %v426, %v497
    %v499 = vlaneseq
    %v500 = vshrl.u32 %v499, 7
    %v501 = vsub.s32 %v474, %v500
    %v502 = vrot.slane %v429, %v501
    %v503 = vlaneseq
    %v504 = vshrl.u32 %v503, 7
    %v505 = vsub.s32 %v474, %v504
    %v506 = vrot.slane %v432, %v505
    %v507 = vlaneseq
    %v508 = vshrl.u32 %v507, 7
    %v509 = vsub.s32 %v474, %v508
    %v510 = vrot.slane %v435, %v509
    %v511 = vlaneseq
    %v512 = vshrl.u32 %v511, 7
    %v513 = vsub.s32 %v474, %v512
    %v514 = vrot.slane %v438, %v513
    %v515 = vlaneseq
    %v516 = vshrl.u32 %v515, 7
    %v517 = vsub.s32 %v474, %v516
    %v518 = vrot.slane %v441, %v517
    %v519 = vlaneseq
    %v520 = vshrl.u32 %v519, 7
    %v521 = vsub.s32 %v474, %v520
    %v522 = vrot.slane %v444, %v521
    %v523 = vlaneseq
    %v524 = vshrl.u32 %v523, 7
    %v525 = vsub.s32 %v474, %v524
    %v526 = vrot.slane %v447, %v525
    %v527 = vlaneseq
    %v528 = vshrl.u32 %v527, 7
    %v529 = vsub.s32 %v474, %v528
    %v530 = vrot.slane %v450, %v529
    %v531 = vlaneseq
    %v532 = vshrl.u32 %v531, 7
    %v533 = vsub.s32 %v474, %v532
    %v534 = vrot.slane %v453, %v533
    %v535 = vlaneseq
    %v536 = vshrl.u32 %v535, 7
    %v537 = vsub.s32 %v474, %v536
    %v538 = vrot.slane %v456, %v537
    %vm539 = vcmask 1041409
    %v540 = vsel %vm539, %v482, %v478
    %vm541 = vcmask 1042434
    %v542 = vsel %vm541, %v486, %v540
    %vm543 = vcmask 1043459
    %v544 = vsel %vm543, %v490, %v542
    %vm545 = vcmask 1044484
    %v546 = vsel %vm545, %v494, %v544
    %vm547 = vcmask 1045509
    %v548 = vsel %vm547, %v498, %v546
    %vm549 = vcmask 1046534
    %v550 = vsel %vm549, %v502, %v548
    %vm551 = vcmask 1047559
    %v552 = vsel %vm551, %v506, %v550
    %v553 = vsel %vm539, %v514, %v510
    %v554 = vsel %vm541, %v518, %v553
    %v555 = vsel %vm543, %v522, %v554
    %v556 = vsel %vm545, %v526, %v555
    %v557 = vsel %vm547, %v530, %v556
    %v558 = vsel %vm549, %v534, %v557
    %v559 = vsel %vm551, %v538, %v558
    %vm562 = vcmask 15360
    %563 = vst.msk [vmem:[%s3] sm:$0xff] %vm562, %v552
    %564 = vst.msk [vmem:[%s3 + $0x8] sm:$0xff] %vm562, %v559
    %v565 = vld [vmem:[%s2] sm:$0xff]
    %v570 = vcombine.low %v266, %v268
    %v571 = vcombine.high %v266, %v268
    %v573 = vunpack.c.l.s4 1966171168
    %v574 = vunpack.c.0.s8 %v573
    %v575 = vlaneseq
    %v576 = vshrl.u32 %v575, 7
    %v577 = vsub.s32 %v574, %v576
    %v578 = vrot.slane %v570, %v577
    %v580 = vunpack.c.l.s4 1966171168
    %v581 = vunpack.c.0.s8 %v580
    %v582 = vlaneseq
    %v583 = vshrl.u32 %v582, 7
    %v584 = vsub.s32 %v581, %v583
    %v585 = vrot.slane %v571, %v584
    %v586 = vcombine.high %v578, %v578
    %v587 = vcombine.high %v585, %v585
    %v589 = vunpack.c.l.s4 1966171168
    %v590 = vunpack.c.0.s8 %v589
    %v591 = vlaneseq
    %v592 = vshrl.u32 %v591, 7
    %v593 = vsub.s32 %v590, %v592
    %v594 = vrot.slane %v578, %v593
    %v596 = vunpack.c.l.s4 1966171168
    %v597 = vunpack.c.0.s8 %v596
    %v598 = vlaneseq
    %v599 = vshrl.u32 %v598, 7
    %v600 = vsub.s32 %v597, %v599
    %v601 = vrot.slane %v585, %v600
    %v603 = vunpack.c.l.s4 1966171168
    %v604 = vunpack.c.0.s8 %v603
    %v605 = vlaneseq
    %v606 = vshrl.u32 %v605, 7
    %v607 = vsub.s32 %v604, %v606
    %v608 = vrot.slane %v586, %v607
    %v610 = vunpack.c.l.s4 1966171168
    %v611 = vunpack.c.0.s8 %v610
    %v612 = vlaneseq
    %v613 = vshrl.u32 %v612, 7
    %v614 = vsub.s32 %v611, %v613
    %v615 = vrot.slane %v587, %v614
    %v616 = vcombine.high %v594, %v594
    %v617 = vcombine.high %v601, %v601
    %v618 = vcombine.high %v608, %v608
    %v619 = vcombine.high %v615, %v615
    %v620 = vcombine.low %v272, %v274
    %v621 = vcombine.high %v272, %v274
    %v623 = vunpack.c.l.s4 1966171168
    %v624 = vunpack.c.0.s8 %v623
    %v625 = vlaneseq
    %v626 = vshrl.u32 %v625, 7
    %v627 = vsub.s32 %v624, %v626
    %v628 = vrot.slane %v620, %v627
    %v630 = vunpack.c.l.s4 1966171168
    %v631 = vunpack.c.0.s8 %v630
    %v632 = vlaneseq
    %v633 = vshrl.u32 %v632, 7
    %v634 = vsub.s32 %v631, %v633
    %v635 = vrot.slane %v621, %v634
    %v636 = vcombine.high %v628, %v628
    %v637 = vcombine.high %v635, %v635
    %v639 = vunpack.c.l.s4 1966171168
    %v640 = vunpack.c.0.s8 %v639
    %v641 = vlaneseq
    %v642 = vshrl.u32 %v641, 7
    %v643 = vsub.s32 %v640, %v642
    %v644 = vrot.slane %v628, %v643
    %v646 = vunpack.c.l.s4 1966171168
    %v647 = vunpack.c.0.s8 %v646
    %v648 = vlaneseq
    %v649 = vshrl.u32 %v648, 7
    %v650 = vsub.s32 %v647, %v649
    %v651 = vrot.slane %v635, %v650
    %v653 = vunpack.c.l.s4 1966171168
    %v654 = vunpack.c.0.s8 %v653
    %v655 = vlaneseq
    %v656 = vshrl.u32 %v655, 7
    %v657 = vsub.s32 %v654, %v656
    %v658 = vrot.slane %v636, %v657
    %v660 = vunpack.c.l.s4 1966171168
    %v661 = vunpack.c.0.s8 %v660
    %v662 = vlaneseq
    %v663 = vshrl.u32 %v662, 7
    %v664 = vsub.s32 %v661, %v663
    %v665 = vrot.slane %v637, %v664
    %v666 = vcombine.high %v644, %v644
    %v667 = vcombine.high %v651, %v651
    %v668 = vcombine.high %v658, %v658
    %v669 = vcombine.high %v665, %v665
    %v670 = vlaneseq
    %v671 = vshrl.u32 %v670, 7
    %v672 = vsub.s32 0, %v671
    %v673 = vrot.slane %v594, %v672
    %v674 = vlaneseq
    %v675 = vshrl.u32 %v674, 7
    %v676 = vsub.s32 1, %v675
    %v677 = vrot.slane %v594, %v676
    %v678 = vlaneseq
    %v679 = vshrl.u32 %v678, 7
    %v680 = vsub.s32 0, %v679
    %v681 = vrot.slane %v608, %v680
    %v682 = vlaneseq
    %v683 = vshrl.u32 %v682, 7
    %v684 = vsub.s32 1, %v683
    %v685 = vrot.slane %v608, %v684
    %v686 = vlaneseq
    %v687 = vshrl.u32 %v686, 7
    %v688 = vsub.s32 0, %v687
    %v689 = vrot.slane %v616, %v688
    %v690 = vlaneseq
    %v691 = vshrl.u32 %v690, 7
    %v692 = vsub.s32 1, %v691
    %v693 = vrot.slane %v616, %v692
    %v694 = vlaneseq
    %v695 = vshrl.u32 %v694, 7
    %v696 = vsub.s32 0, %v695
    %v697 = vrot.slane %v618, %v696
    %v698 = vlaneseq
    %v699 = vshrl.u32 %v698, 7
    %v700 = vsub.s32 1, %v699
    %v701 = vrot.slane %v618, %v700
    %v702 = vlaneseq
    %v703 = vshrl.u32 %v702, 7
    %v704 = vsub.s32 0, %v703
    %v705 = vrot.slane %v601, %v704
    %v706 = vlaneseq
    %v707 = vshrl.u32 %v706, 7
    %v708 = vsub.s32 1, %v707
    %v709 = vrot.slane %v601, %v708
    %v710 = vlaneseq
    %v711 = vshrl.u32 %v710, 7
    %v712 = vsub.s32 0, %v711
    %v713 = vrot.slane %v615, %v712
    %v714 = vlaneseq
    %v715 = vshrl.u32 %v714, 7
    %v716 = vsub.s32 1, %v715
    %v717 = vrot.slane %v615, %v716
    %v718 = vlaneseq
    %v719 = vshrl.u32 %v718, 7
    %v720 = vsub.s32 0, %v719
    %v721 = vrot.slane %v617, %v720
    %v722 = vlaneseq
    %v723 = vshrl.u32 %v722, 7
    %v724 = vsub.s32 1, %v723
    %v725 = vrot.slane %v617, %v724
    %v726 = vlaneseq
    %v727 = vshrl.u32 %v726, 7
    %v728 = vsub.s32 0, %v727
    %v729 = vrot.slane %v619, %v728
    %v730 = vlaneseq
    %v731 = vshrl.u32 %v730, 7
    %v732 = vsub.s32 1, %v731
    %v733 = vrot.slane %v619, %v732
    %v734 = vlaneseq
    %v735 = vshrl.u32 %v734, 7
    %v736 = vsub.s32 0, %v735
    %v737 = vrot.slane %v644, %v736
    %v738 = vlaneseq
    %v739 = vshrl.u32 %v738, 7
    %v740 = vsub.s32 1, %v739
    %v741 = vrot.slane %v644, %v740
    %v742 = vlaneseq
    %v743 = vshrl.u32 %v742, 7
    %v744 = vsub.s32 0, %v743
    %v745 = vrot.slane %v658, %v744
    %v746 = vlaneseq
    %v747 = vshrl.u32 %v746, 7
    %v748 = vsub.s32 1, %v747
    %v749 = vrot.slane %v658, %v748
    %v750 = vlaneseq
    %v751 = vshrl.u32 %v750, 7
    %v752 = vsub.s32 0, %v751
    %v753 = vrot.slane %v666, %v752
    %v754 = vlaneseq
    %v755 = vshrl.u32 %v754, 7
    %v756 = vsub.s32 1, %v755
    %v757 = vrot.slane %v666, %v756
    %v758 = vlaneseq
    %v759 = vshrl.u32 %v758, 7
    %v760 = vsub.s32 0, %v759
    %v761 = vrot.slane %v668, %v760
    %v762 = vlaneseq
    %v763 = vshrl.u32 %v762, 7
    %v764 = vsub.s32 1, %v763
    %v765 = vrot.slane %v668, %v764
    %v766 = vlaneseq
    %v767 = vshrl.u32 %v766, 7
    %v768 = vsub.s32 0, %v767
    %v769 = vrot.slane %v651, %v768
    %v770 = vlaneseq
    %v771 = vshrl.u32 %v770, 7
    %v772 = vsub.s32 1, %v771
    %v773 = vrot.slane %v651, %v772
    %v774 = vlaneseq
    %v775 = vshrl.u32 %v774, 7
    %v776 = vsub.s32 0, %v775
    %v777 = vrot.slane %v665, %v776
    %v778 = vlaneseq
    %v779 = vshrl.u32 %v778, 7
    %v780 = vsub.s32 1, %v779
    %v781 = vrot.slane %v665, %v780
    %v782 = vlaneseq
    %v783 = vshrl.u32 %v782, 7
    %v784 = vsub.s32 0, %v783
    %v785 = vrot.slane %v667, %v784
    %v786 = vlaneseq
    %v787 = vshrl.u32 %v786, 7
    %v788 = vsub.s32 1, %v787
    %v789 = vrot.slane %v667, %v788
    %v790 = vlaneseq
    %v791 = vshrl.u32 %v790, 7
    %v792 = vsub.s32 0, %v791
    %v793 = vrot.slane %v669, %v792
    %v794 = vlaneseq
    %v795 = vshrl.u32 %v794, 7
    %v796 = vsub.s32 1, %v795
    %v797 = vrot.slane %v669, %v796
    %v830 = vmul.f32 %v673, %v40
    %v831 = vmul.f32 %v677, %v41
    %v832 = vmul.f32 %v681, %v40
    %v833 = vmul.f32 %v685, %v41
    %v834 = vmul.f32 %v689, %v40
    %v835 = vmul.f32 %v693, %v41
    %v836 = vmul.f32 %v697, %v40
    %v837 = vmul.f32 %v701, %v41
    %v838 = vmul.f32 %v705, %v40
    %v839 = vmul.f32 %v709, %v41
    %v840 = vmul.f32 %v713, %v40
    %v841 = vmul.f32 %v717, %v41
    %v842 = vmul.f32 %v721, %v40
    %v843 = vmul.f32 %v725, %v41
    %v844 = vmul.f32 %v729, %v40
    %v845 = vmul.f32 %v733, %v41
    %v846 = vmul.f32 %v737, %v40
    %v847 = vmul.f32 %v741, %v41
    %v848 = vmul.f32 %v745, %v40
    %v849 = vmul.f32 %v749, %v41
    %v850 = vmul.f32 %v753, %v40
    %v851 = vmul.f32 %v757, %v41
    %v852 = vmul.f32 %v761, %v40
    %v853 = vmul.f32 %v765, %v41
    %v854 = vmul.f32 %v769, %v40
    %v855 = vmul.f32 %v773, %v41
    %v856 = vmul.f32 %v777, %v40
    %v857 = vmul.f32 %v781, %v41
    %v858 = vmul.f32 %v785, %v40
    %v859 = vmul.f32 %v789, %v41
    %v860 = vmul.f32 %v793, %v40
    %v861 = vmul.f32 %v797, %v41
    %862 = vmatprep.subr.mxu0 %v831
    %863 = vmatpush1.msra.mxu0 %v830
    %864 = vmatprep.subr.mxu0 %v833
    %865 = vmatpush1.msra.mxu0 %v832
    %866 = vmatprep.subr.mxu0 %v835
    %867 = vmatpush1.msra.mxu0 %v834
    %868 = vmatprep.subr.mxu0 %v837
    %869 = vmatpush1.msra.mxu0 %v836
    %870 = vmatprep.subr.mxu0 %v839
    %871 = vmatpush1.msra.mxu0 %v838
    %872 = vmatprep.subr.mxu0 %v841
    %873 = vmatpush1.msra.mxu0 %v840
    %874 = vmatprep.subr.mxu0 %v843
    %875 = vmatpush1.msra.mxu0 %v842
    %876 = vmatprep.subr.mxu0 %v845
    %877 = vmatpush1.msra.mxu0 %v844
    %878 = vmatprep.subr.mxu0 %v847
    %879 = vmatpush1.msra.mxu0 %v846
    %880 = vmatprep.subr.mxu0 %v849
    %881 = vmatpush1.msra.mxu0 %v848
    %882 = vmatprep.subr.mxu0 %v851
    %883 = vmatpush1.msra.mxu0 %v850
    %884 = vmatprep.subr.mxu0 %v853
    %885 = vmatpush1.msra.mxu0 %v852
    %886 = vmatprep.subr.mxu0 %v855
    %887 = vmatpush1.msra.mxu0 %v854
    %888 = vmatprep.subr.mxu0 %v857
    %889 = vmatpush1.msra.mxu0 %v856
    %890 = vmatprep.subr.mxu0 %v859
    %891 = vmatpush1.msra.mxu0 %v858
    %892 = vmatprep.subr.mxu0 %v861
    %893 = vmatpush1.msra.mxu0 %v860
    %894 = vmatprep.subr.mxu0 0.0
    %895 = vmatpush1.msra.mxu0 0.0
    %896 = vmatprep.subr.mxu0 0.0
    %897 = vmatpush1.msra.mxu0 0.0
    %898 = vmatprep.subr.mxu0 0.0
    %899 = vmatpush1.msra.mxu0 0.0
    %900 = vmatprep.subr.mxu0 0.0
    %901 = vmatpush1.msra.mxu0 0.0
    %902 = vmatprep.subr.mxu0 0.0
    %903 = vmatpush1.msra.mxu0 0.0
    %904 = vmatprep.subr.mxu0 0.0
    %905 = vmatpush1.msra.mxu0 0.0
    %906 = vmatprep.subr.mxu0 0.0
    %907 = vmatpush1.msra.mxu0 0.0
    %908 = vmatprep.subr.mxu0 0.0
    %909 = vmatpush1.msra.mxu0 0.0
    %910 = vmatprep.subr.mxu0 0.0
    %911 = vmatpush1.msra.mxu0 0.0
    %912 = vmatprep.subr.mxu0 0.0
    %913 = vmatpush1.msra.mxu0 0.0
    %914 = vmatprep.subr.mxu0 0.0
    %915 = vmatpush1.msra.mxu0 0.0
    %916 = vmatprep.subr.mxu0 0.0
    %917 = vmatpush1.msra.mxu0 0.0
    %918 = vmatprep.subr.mxu0 0.0
    %919 = vmatpush1.msra.mxu0 0.0
    %920 = vmatprep.subr.mxu0 0.0
    %921 = vmatpush1.msra.mxu0 0.0
    %922 = vmatprep.subr.mxu0 0.0
    %923 = vmatpush1.msra.mxu0 0.0
    %924 = vmatprep.subr.mxu0 0.0
    %925 = vmatpush1.msra.mxu0 0.0
    %926 = vmatprep.mubr.f32.mxu0 0.0
    %927 = vmatmul.mubr.f32.gmra.mrb[0].mxu0 %v565
    %v928 = vpop.f32.mrb[0].mxu0
    %v929 = vadd.f32 0.0, %v928
    %v930 = vpop.f32.mrb[0].mxu0
    %v931 = vadd.f32 0.0, %v930
    %932 = vdwg.mxu0
    %v933 = vcombine.high %v929, 0.0
    %v935 = vunpack.c.l.s4 1983009808
    %v936 = vunpack.c.0.s8 %v935
    %v937 = vlaneseq
    %v938 = vshrl.u32 %v937, 7
    %v939 = vsub.s32 %v936, %v938
    %v940 = vrot.slane %v929, %v939
    %v942 = vunpack.c.l.s4 1983009808
    %v943 = vunpack.c.0.s8 %v942
    %v944 = vlaneseq
    %v945 = vshrl.u32 %v944, 7
    %v946 = vsub.s32 %v943, %v945
    %v947 = vrot.slane %v933, %v946
    %v948 = vcombine.high %v931, 0.0
    %v950 = vunpack.c.l.s4 1983009808
    %v951 = vunpack.c.0.s8 %v950
    %v952 = vlaneseq
    %v953 = vshrl.u32 %v952, 7
    %v954 = vsub.s32 %v951, %v953
    %v955 = vrot.slane %v931, %v954
    %v957 = vunpack.c.l.s4 1983009808
    %v958 = vunpack.c.0.s8 %v957
    %v959 = vlaneseq
    %v960 = vshrl.u32 %v959, 7
    %v961 = vsub.s32 %v958, %v960
    %v962 = vrot.slane %v948, %v961
    %v963 = vcombine.low %v940, %v955
    %v964 = vcombine.high %v940, %v955
    %v966 = vunpack.c.l.s4 1934713408
    %v967 = vunpack.c.0.s8 %v966
    %v968 = vlaneseq
    %v969 = vshrl.u32 %v968, 7
    %v970 = vsub.s32 %v967, %v969
    %v971 = vrot.slane %v963, %v970
    %v973 = vunpack.c.l.s4 1934713408
    %v974 = vunpack.c.0.s8 %v973
    %v975 = vlaneseq
    %v976 = vshrl.u32 %v975, 7
    %v977 = vsub.s32 %v974, %v976
    %v978 = vrot.slane %v964, %v977
    %v979 = vcombine.low %v947, %v962
    %v980 = vcombine.high %v947, %v962
    %v982 = vunpack.c.l.s4 1934713408
    %v983 = vunpack.c.0.s8 %v982
    %v984 = vlaneseq
    %v985 = vshrl.u32 %v984, 7
    %v986 = vsub.s32 %v983, %v985
    %v987 = vrot.slane %v979, %v986
    %v989 = vunpack.c.l.s4 1934713408
    %v990 = vunpack.c.0.s8 %v989
    %v991 = vlaneseq
    %v992 = vshrl.u32 %v991, 7
    %v993 = vsub.s32 %v990, %v992
    %v994 = vrot.slane %v980, %v993
    %v995 = vcombine.high %v971, 0.0
    %v996 = vcombine.high %v978, 0.0
    %v997 = vcombine.high %v987, 0.0
    %v998 = vcombine.high %v994, 0.0
    %v999 = vsel %vm408, %v971, 0.0
    %1000 = vadd.xlane.f32.xlu0 %v999
    %v1001 = vpop.xlane.xlu0 %1000
    %v1002 = vsel %vm408, %v995, 0.0
    %1003 = vadd.xlane.f32.xlu0 %v1002
    %v1004 = vpop.xlane.xlu0 %1003
    %v1005 = vsel %vm408, %v978, 0.0
    %1006 = vadd.xlane.f32.xlu0 %v1005
    %v1007 = vpop.xlane.xlu0 %1006
    %v1008 = vsel %vm408, %v996, 0.0
    %1009 = vadd.xlane.f32.xlu0 %v1008
    %v1010 = vpop.xlane.xlu0 %1009
    %v1011 = vsel %vm408, %v987, 0.0
    %1012 = vadd.xlane.f32.xlu0 %v1011
    %v1013 = vpop.xlane.xlu0 %1012
    %v1014 = vsel %vm408, %v997, 0.0
    %1015 = vadd.xlane.f32.xlu0 %v1014
    %v1016 = vpop.xlane.xlu0 %1015
    %v1017 = vsel %vm408, %v994, 0.0
    %1018 = vadd.xlane.f32.xlu0 %v1017
    %v1019 = vpop.xlane.xlu0 %1018
    %v1020 = vsel %vm408, %v998, 0.0
    %1021 = vadd.xlane.f32.xlu0 %v1020
    %v1022 = vpop.xlane.xlu0 %1021
    %v1031 = vlaneseq
    %v1032 = vshrl.u32 %v1031, 7
    %v1033 = vsub.s32 %v474, %v1032
    %v1034 = vrot.slane %v1001, %v1033
    %v1035 = vlaneseq
    %v1036 = vshrl.u32 %v1035, 7
    %v1037 = vsub.s32 %v474, %v1036
    %v1038 = vrot.slane %v1004, %v1037
    %v1039 = vlaneseq
    %v1040 = vshrl.u32 %v1039, 7
    %v1041 = vsub.s32 %v474, %v1040
    %v1042 = vrot.slane %v1007, %v1041
    %v1043 = vlaneseq
    %v1044 = vshrl.u32 %v1043, 7
    %v1045 = vsub.s32 %v474, %v1044
    %v1046 = vrot.slane %v1010, %v1045
    %v1047 = vlaneseq
    %v1048 = vshrl.u32 %v1047, 7
    %v1049 = vsub.s32 %v474, %v1048
    %v1050 = vrot.slane %v1013, %v1049
    %v1051 = vlaneseq
    %v1052 = vshrl.u32 %v1051, 7
    %v1053 = vsub.s32 %v474, %v1052
    %v1054 = vrot.slane %v1016, %v1053
    %v1055 = vlaneseq
    %v1056 = vshrl.u32 %v1055, 7
    %v1057 = vsub.s32 %v474, %v1056
    %v1058 = vrot.slane %v1019, %v1057
    %v1059 = vlaneseq
    %v1060 = vshrl.u32 %v1059, 7
    %v1061 = vsub.s32 %v474, %v1060
    %v1062 = vrot.slane %v1022, %v1061
    %v1063 = vsel %vm539, %v1038, %v1034
    %v1064 = vsel %vm541, %v1042, %v1063
    %v1065 = vsel %vm543, %v1046, %v1064
    %v1066 = vsel %vm545, %v1050, %v1065
    %v1067 = vsel %vm547, %v1054, %v1066
    %v1068 = vsel %vm549, %v1058, %v1067
    %v1069 = vsel %vm551, %v1062, %v1068
    %1071 = vst.msk [vmem:[%s3 + $0x10] sm:$0xff] %vm562, %v1069
    // Predicated region
    $region22: #{_cin_forward_impl.1} parent=1 // pred_check
      _
    $region23: #{_cin_forward_impl.1} parent=1 // pred_check_branch
      %1073 = sbr.rel (0) target = $region25
    $region24: #{_cin_forward_impl.1} parent=1 // pred_region
      _
    $region25: #{_cin_forward_impl.1} parent=1 // pred_fallthru
      _
    // Predicated region
    $region26: #{_cin_forward_impl.1} parent=1 // pred_check
      _
    $region27: #{_cin_forward_impl.1} parent=1 // pred_check_branch
      %1075 = sbr.rel (0) target = $region29
    $region28: #{_cin_forward_impl.1} parent=1 // pred_region
      _
    $region29: #{_cin_forward_impl.1} parent=1 // pred_fallthru
      _
    %1076 = vsyncpa [#allocation3], 1
    %1077 = vsyncpa [#allocation5], 1

</llo_original>
